<compile_context>
chip_gen: v7x
topology: tpu7x:2x2x1
jax: 0.10.0
libtpu: 0.0.40
codegen_flags: <defaults>
</compile_context>

<pallas_src>
import math

import jax
import jax.numpy as jnp
from jax import lax
from jax.experimental import pallas as pl
from jax.experimental.pallas import tpu as pltpu


def _flash_mha_kernel(q_ref, k_ref, v_ref, wo_ref, o_ref,
                      acc_ref, m_ref, l_ref, ov_ref):
    # Block shapes:
    #   q_ref : (1, 1, tq,  d_k)  this (b, h, qi) query tile (scale pre-folded)
    #   k_ref : (1, 1, tkv, d_k)  this (b, h, kv) key tile
    #   v_ref : (1, 1, tkv, d_k)  this (b, h, kv) value tile
    #   wo_ref: (H, d_k, D)       full Wo^T, resident for the whole call
    #   o_ref : (1, tq, D)        output tile of this (b, qi)
    #   acc_ref: (tq, D)  f32     Wo-projected output, accumulated over heads
    #   m_ref : (tq, 1)   f32     online-softmax running max
    #   l_ref : (tq, 1)   f32     online-softmax running denominator
    #   ov_ref: (tq, d_k) f32     unnormalized P @ V accumulator (this head)
    qi = pl.program_id(1)
    h = pl.program_id(2)
    kv = pl.program_id(3)
    n_h = pl.num_programs(2)
    n_kv = pl.num_programs(3)

    tq = q_ref.shape[2]
    tkv = k_ref.shape[2]

    @pl.when(jnp.logical_and(h == 0, kv == 0))
    def _():
        acc_ref[...] = jnp.zeros_like(acc_ref)

    @pl.when(kv == 0)
    def _():
        m_ref[...] = jnp.full(m_ref.shape, -jnp.inf, dtype=m_ref.dtype)
        l_ref[...] = jnp.zeros_like(l_ref)
        ov_ref[...] = jnp.zeros_like(ov_ref)

    # Causal tile skip: with tq == tkv, kv tile `kv` is (partially) visible to
    # q tile `qi` iff kv <= qi.  Skipped tiles do no compute, and the clamped
    # K/V index_map means they also trigger no new DMA.
    @pl.when(kv <= qi)
    def _():
        q = q_ref[0, 0]                      # (tq,  d_k)  compute dtype
        k = k_ref[0, 0]                      # (tkv, d_k)
        v = v_ref[0, 0]                      # (tkv, d_k)

        # Scores q @ k^T (contract last dims; no in-kernel transpose), f32 acc.
        s = lax.dot_general(q, k, (((1,), (1,)), ((), ())),
                            preferred_element_type=jnp.float32)   # (tq, tkv)

        # Causal mask only on the diagonal tile (large finite negative, not
        # -inf); off-diagonal visible tiles skip the iota/compare/select.
        def _masked(sv):
            row = qi * tq + lax.broadcasted_iota(jnp.int32, (tq, tkv), 0)
            col = kv * tkv + lax.broadcasted_iota(jnp.int32, (tq, tkv), 1)
            return jnp.where(col <= row, sv, -1e30)

        s = lax.cond(kv == qi, _masked, lambda sv: sv, s)

        # Online (flash) softmax statistics, all float32.
        m_prev = m_ref[...]
        m_new = jnp.maximum(m_prev, jnp.max(s, axis=-1, keepdims=True))
        alpha = jnp.exp(m_prev - m_new)
        p = jnp.exp(s - m_new)                                    # (tq, tkv) f32
        l_ref[...] = alpha * l_ref[...] + jnp.sum(p, axis=-1, keepdims=True)
        ov_ref[...] = alpha * ov_ref[...] + jnp.dot(
            p.astype(v.dtype), v, preferred_element_type=jnp.float32)
        m_ref[...] = m_new

    # Finalize this head: deferred softmax normalization on the (tq, d_k)
    # output (not the (tq, S) probabilities), then fuse head-concat + Wo as an
    # accumulation over the head grid axis.
    @pl.when(kv == n_kv - 1)
    def _():
        inv = pl.reciprocal(l_ref[...], approx=True)              # EUP slot
        o_h = ov_ref[...] * inv                                   # (tq, d_k)
        acc_ref[...] += jnp.dot(o_h.astype(wo_ref.dtype), wo_ref[h],
                                preferred_element_type=jnp.float32)

    @pl.when(jnp.logical_and(kv == n_kv - 1, h == n_h - 1))
    def _():
        o_ref[0] = acc_ref[...].astype(o_ref.dtype)


def multihead_attention(x, wq, wk, wv, wo, *, num_heads, q_tile=256,
                        compute_dtype=jnp.bfloat16):
    B, S, D = x.shape
    assert D % num_heads == 0
    d_k = D // num_heads
    tq = min(S, q_tile)
    assert S % tq == 0, "sequence length must be a multiple of the q tile"
    tkv = tq                                  # equal tiles keep causal skip simple
    n_q = S // tq
    n_kv = S // tkv
    scale = 1.0 / math.sqrt(d_k)

    # --- Wrapper-side precompute (one XLA matmul each; free layout plumbing).
    # PyTorch Linear stores W as (out, in) and computes x @ W.T; fold the
    # 1/sqrt(d_k) scale into Wq.  Reshape to per-head (B, H, S, d_k) tiles and
    # cast MXU operands to the compute dtype (softmax stays f32 in-kernel).
    def to_heads(t):
        return t.reshape(B, S, num_heads, d_k).transpose(0, 2, 1, 3).astype(compute_dtype)

    xf = x.astype(jnp.float32)
    qh = to_heads(xf @ (wq * scale).T.astype(jnp.float32))
    kh = to_heads(xf @ wk.T.astype(jnp.float32))
    vh = to_heads(xf @ wv.T.astype(jnp.float32))

    # Per-head rows of Wo^T: (H, d_k, D).  Constant block index -> fetched once
    # and held resident in VMEM for the whole call.
    wo_h = wo.T.reshape(num_heads, d_k, D).astype(compute_dtype)

    # --- Advisory cost estimate (attention only: projections are outside).
    visible_pairs = (n_q * (n_q + 1) // 2) * tq * tkv            # causal (q, k) pairs
    kv_tiles_fetched = n_q * (n_q + 1) // 2
    itemsize = jnp.dtype(compute_dtype).itemsize
    flops = int(B * num_heads * 4 * visible_pairs * d_k          # scores + PV
                + 2 * B * S * D * D)                             # fused Wo
    transcendentals = int(B * num_heads * visible_pairs)         # exp
    bytes_accessed = int(
        itemsize * (B * num_heads * S * d_k                      # Q, read once
                    + 2 * B * num_heads * kv_tiles_fetched * tkv * d_k  # K + V re-reads
                    + num_heads * d_k * D)                       # Wo, fetched once
        + jnp.dtype(x.dtype).itemsize * B * S * D)               # output write

    grid = (B, n_q, num_heads, n_kv)          # reduction axes (h, kv) last
    return pl.pallas_call(
        _flash_mha_kernel,
        out_shape=jax.ShapeDtypeStruct((B, S, D), x.dtype),
        grid_spec=pltpu.PrefetchScalarGridSpec(
            num_scalar_prefetch=0,
            grid=grid,
            in_specs=[
                # Q tile: resident across the kv axis.
                pl.BlockSpec((1, 1, tq, d_k),
                             lambda b, qi, h, kv: (b, h, qi, 0)),
                # K/V tiles: clamp to the diagonal tile so causally-skipped
                # steps reuse the already-resident block (no DMA).
                pl.BlockSpec((1, 1, tkv, d_k),
                             lambda b, qi, h, kv: (b, h, jnp.minimum(kv, qi), 0)),
                pl.BlockSpec((1, 1, tkv, d_k),
                             lambda b, qi, h, kv: (b, h, jnp.minimum(kv, qi), 0)),
                # Full Wo^T, constant block index -> fetched once.
                pl.BlockSpec((num_heads, d_k, D),
                             lambda b, qi, h, kv: (0, 0, 0)),
            ],
            out_specs=pl.BlockSpec((1, tq, D), lambda b, qi, h, kv: (b, qi, 0)),
            scratch_shapes=[
                pltpu.VMEM((tq, D), jnp.float32),     # acc over heads (post-Wo)
                pltpu.VMEM((tq, 1), jnp.float32),     # running max
                pltpu.VMEM((tq, 1), jnp.float32),     # running denominator
                pltpu.VMEM((tq, d_k), jnp.float32),   # unnormalized P @ V
            ],
        ),
        compiler_params=pltpu.CompilerParams(
            dimension_semantics=("parallel", "parallel", "arbitrary", "arbitrary"),
            vmem_limit_bytes=32 * 1024 * 1024),
        cost_estimate=pl.CostEstimate(
            flops=flops,
            transcendentals=transcendentals,
            bytes_accessed=bytes_accessed),
    )(qh, kh, vh, wo_h)


def _reference(x, wq, wk, wv, wo, num_heads):
    # Pure-JAX reference mirroring the PyTorch forward (attn_pdrop = 0).
    B, S, D = x.shape
    d_k = D // num_heads
    q = (x @ wq.T).reshape(B, S, num_heads, d_k).transpose(0, 2, 1, 3)
    k = (x @ wk.T).reshape(B, S, num_heads, d_k).transpose(0, 2, 1, 3)
    v = (x @ wv.T).reshape(B, S, num_heads, d_k).transpose(0, 2, 1, 3)
    s = jnp.einsum("bhqd,bhkd->bhqk", q, k) / math.sqrt(d_k)
    mask = jnp.triu(jnp.ones((S, S), dtype=bool), k=1)
    s = jnp.where(mask, -jnp.inf, s)
    p = jax.nn.softmax(s, axis=-1)
    out = jnp.einsum("bhqk,bhkd->bhqd", p, v)
    out = out.transpose(0, 2, 1, 3).reshape(B, S, D)
    return out @ wo.T


if __name__ == "__main__":
    # Small shapes consistent with the module: batch=2, seq=8, d_model=32, heads=4
    B, S, D, H = 2, 8, 32, 4

    key = jax.random.PRNGKey(0)
    kx, kq, kk, kv_, ko = jax.random.split(key, 5)
    bound = 1.0 / math.sqrt(D)  # nn.Linear default uniform init range
    x = jax.random.normal(kx, (B, S, D), dtype=jnp.float32)
    wq = jax.random.uniform(kq, (D, D), jnp.float32, -bound, bound)
    wk = jax.random.uniform(kk, (D, D), jnp.float32, -bound, bound)
    wv = jax.random.uniform(kv_, (D, D), jnp.float32, -bound, bound)
    wo = jax.random.uniform(ko, (D, D), jnp.float32, -bound, bound)

    ref = _reference(x, wq, wk, wv, wo, H)

    # Float32 MXU path: tight tolerance (only approx EUP reciprocal ~2^-12 and
    # online-softmax op ordering differ from the reference).
    out_f32 = jax.block_until_ready(
        multihead_attention(x, wq, wk, wv, wo, num_heads=H,
                            compute_dtype=jnp.float32))
    assert out_f32.shape == (B, S, D)
    assert jnp.allclose(out_f32, ref, atol=2e-3, rtol=2e-3), "f32 mismatch vs reference"

    # Default bfloat16 MXU path (the fast path on v5e/v6e/v7x): looser tolerance
    # for bf16-rounded matmul operands; mask/exp/sum/accumulators stay float32.
    out_bf16 = jax.block_until_ready(
        multihead_attention(x, wq, wk, wv, wo, num_heads=H))
    assert out_bf16.shape == (B, S, D)
    assert jnp.allclose(out_bf16, ref, atol=2e-2, rtol=2e-2), "bf16 mismatch vs reference"

    print("KERNEL_OK")
</pallas_src>

<mosaic_0001>
module attributes {stable_mosaic.version = 11 : i64} {
  func.func @_flash_mha_kernel(%arg0: i32, %arg1: i32, %arg2: i32, %arg3: i32, %arg4: memref<1x1x8x8xf32, #tpu.memory_space<vmem>>, %arg5: memref<1x1x8x8xf32, #tpu.memory_space<vmem>>, %arg6: memref<1x1x8x8xf32, #tpu.memory_space<vmem>>, %arg7: memref<4x8x32xf32, #tpu.memory_space<vmem>>, %arg8: memref<1x8x32xf32, #tpu.memory_space<vmem>>, %arg9: memref<8x32xf32, #tpu.memory_space<vmem>>, %arg10: memref<8x1xf32, #tpu.memory_space<vmem>>, %arg11: memref<8x1xf32, #tpu.memory_space<vmem>>, %arg12: memref<8x8xf32, #tpu.memory_space<vmem>>) attributes {dimension_semantics = [#tpu.dimension_semantics<parallel>, #tpu.dimension_semantics<parallel>, #tpu.dimension_semantics<arbitrary>, #tpu.dimension_semantics<arbitrary>], iteration_bounds = array<i64: 2, 1, 4, 1>, scalar_prefetch = 0 : i64, scratch_operands = 4 : i64, tpu.core_type = #tpu.core_type<tc>, window_params = [{transform_indices = @transform_0, window_bounds = array<i64: 1, 1, 8, 8>}, {transform_indices = @transform_1, window_bounds = array<i64: 1, 1, 8, 8>}, {transform_indices = @transform_2, window_bounds = array<i64: 1, 1, 8, 8>}, {pipeline_mode = #tpu.pipeline_mode<synchronous>, transform_indices = @transform_3, window_bounds = array<i64: 4, 8, 32>}, {transform_indices = @transform_4, window_bounds = array<i64: 1, 8, 32>}]} {
    %c0_i32 = arith.constant 0 : i32
    %0 = arith.cmpi eq, %arg2, %c0_i32 : i32
    %c0_i32_0 = arith.constant 0 : i32
    %1 = arith.cmpi eq, %arg3, %c0_i32_0 : i32
    %2 = arith.andi %0, %1 : i1
    %3 = arith.extui %2 : i1 to i32
    %c0_i32_1 = arith.constant 0 : i32
    %4 = arith.cmpi ne, %3, %c0_i32_1 : i32
    scf.if %4 {
      %cst = arith.constant 0.000000e+00 : f32
      %19 = vector.broadcast %cst : f32 to vector<8x32xf32>
      %c0 = arith.constant 0 : index
      %c0_9 = arith.constant 0 : index
      %20 = vector.load %arg9[%c0, %c0_9] : memref<8x32xf32, #tpu.memory_space<vmem>>, vector<8x32xf32>
      tpu.vector_store %arg9[%c0, %c0_9], %19 {strides = array<i32>} : memref<8x32xf32, #tpu.memory_space<vmem>>, vector<8x32xf32>,
    } else {
    }
    %c0_i32_2 = arith.constant 0 : i32
    %5 = arith.cmpi eq, %arg3, %c0_i32_2 : i32
    %6 = arith.extui %5 : i1 to i32
    %c0_i32_3 = arith.constant 0 : i32
    %7 = arith.cmpi ne, %6, %c0_i32_3 : i32
    scf.if %7 {
      %cst = arith.constant 0xFF800000 : f32
      %19 = vector.broadcast %cst : f32 to vector<8x1xf32>
      %c0 = arith.constant 0 : index
      %c0_9 = arith.constant 0 : index
      %20 = vector.load %arg10[%c0, %c0_9] : memref<8x1xf32, #tpu.memory_space<vmem>>, vector<8x1xf32>
      tpu.vector_store %arg10[%c0, %c0_9], %19 {strides = array<i32>} : memref<8x1xf32, #tpu.memory_space<vmem>>, vector<8x1xf32>,
      %cst_10 = arith.constant 0.000000e+00 : f32
      %21 = vector.broadcast %cst_10 : f32 to vector<8x1xf32>
      %c0_11 = arith.constant 0 : index
      %c0_12 = arith.constant 0 : index
      %22 = vector.load %arg11[%c0_11, %c0_12] : memref<8x1xf32, #tpu.memory_space<vmem>>, vector<8x1xf32>
      tpu.vector_store %arg11[%c0_11, %c0_12], %21 {strides = array<i32>} : memref<8x1xf32, #tpu.memory_space<vmem>>, vector<8x1xf32>,
      %cst_13 = arith.constant 0.000000e+00 : f32
      %23 = vector.broadcast %cst_13 : f32 to vector<8x8xf32>
      %c0_14 = arith.constant 0 : index
      %c0_15 = arith.constant 0 : index
      %24 = vector.load %arg12[%c0_14, %c0_15] : memref<8x8xf32, #tpu.memory_space<vmem>>, vector<8x8xf32>
      tpu.vector_store %arg12[%c0_14, %c0_15], %23 {strides = array<i32>} : memref<8x8xf32, #tpu.memory_space<vmem>>, vector<8x8xf32>,
    } else {
    }
    %8 = arith.cmpi sle, %arg3, %arg1 : i32
    %9 = arith.extui %8 : i1 to i32
    %c0_i32_4 = arith.constant 0 : i32
    %10 = arith.cmpi ne, %9, %c0_i32_4 : i32
    scf.if %10 {
      %c0 = arith.constant 0 : index
      %c0_9 = arith.constant 0 : index
      %c0_10 = arith.constant 0 : index
      %c0_11 = arith.constant 0 : index
      %19 = vector.load %arg4[%c0, %c0_9, %c0_10, %c0_11] : memref<1x1x8x8xf32, #tpu.memory_space<vmem>>, vector<1x1x8x8xf32>
      %20 = vector.shape_cast %19 : vector<1x1x8x8xf32> to vector<8x8xf32>
      %c0_12 = arith.constant 0 : index
      %c0_13 = arith.constant 0 : index
      %c0_14 = arith.constant 0 : index
      %c0_15 = arith.constant 0 : index
      %21 = vector.load %arg5[%c0_12, %c0_13, %c0_14, %c0_15] : memref<1x1x8x8xf32, #tpu.memory_space<vmem>>, vector<1x1x8x8xf32>
      %22 = vector.shape_cast %21 : vector<1x1x8x8xf32> to vector<8x8xf32>
      %c0_16 = arith.constant 0 : index
      %c0_17 = arith.constant 0 : index
      %c0_18 = arith.constant 0 : index
      %c0_19 = arith.constant 0 : index
      %23 = vector.load %arg6[%c0_16, %c0_17, %c0_18, %c0_19] : memref<1x1x8x8xf32, #tpu.memory_space<vmem>>, vector<1x1x8x8xf32>
      %24 = vector.shape_cast %23 : vector<1x1x8x8xf32> to vector<8x8xf32>
      %cst = arith.constant dense<0.000000e+00> : vector<8x8xf32>
      %25 = tpu.matmul %20, %22, %cst {dimension_numbers = #tpu.dot_dimension_numbers<[1], [1], [0], [0], [0, 0, 1, 0], [], []>} : vector<8x8xf32>, vector<8x8xf32>, vector<8x8xf32> -> vector<8x8xf32>
      %26 = arith.cmpi eq, %arg3, %arg1 : i32
      %27 = arith.extui %26 : i1 to i32
      %c0_i32_20 = arith.constant 0 : i32
      %28 = arith.cmpi ne, %27, %c0_i32_20 : i32
      %29 = scf.if %28 -> (vector<8x8xf32>) {
        %c8_i32 = arith.constant 8 : i32
        %52 = arith.muli %arg1, %c8_i32 : i32
        %53 = tpu.iota {dimensions = array<i32: 0>} : vector<8x8xi32>
        %54 = vector.broadcast %52 : i32 to vector<8x8xi32>
        %55 = arith.addi %54, %53 : vector<8x8xi32>
        %c8_i32_36 = arith.constant 8 : i32
        %56 = arith.muli %arg3, %c8_i32_36 : i32
        %57 = tpu.iota {dimensions = array<i32: 1>} : vector<8x8xi32>
        %58 = vector.broadcast %56 : i32 to vector<8x8xi32>
        %59 = arith.addi %58, %57 : vector<8x8xi32>
        %60 = arith.cmpi sle, %59, %55 : vector<8x8xi32>
        %cst_37 = arith.constant -1.000000e+30 : f32
        %61 = vector.broadcast %cst_37 : f32 to vector<8x8xf32>
        %62 = arith.select %60, %25, %61 : vector<8x8xi1>, vector<8x8xf32>
        scf.yield %62 : vector<8x8xf32>
      } else {
        scf.yield %25 : vector<8x8xf32>
      }
      %c0_21 = arith.constant 0 : index
      %c0_22 = arith.constant 0 : index
      %30 = vector.load %arg10[%c0_21, %c0_22] : memref<8x1xf32, #tpu.memory_space<vmem>>, vector<8x1xf32>
      %cst_23 = arith.constant dense<0xFF800000> : vector<8xf32>
      %31 = vector.multi_reduction <maximumf>, %29, %cst_23 [1] : vector<8x8xf32> to vector<8xf32>
      %32 = vector.shape_cast %31 : vector<8xf32> to vector<8x1xf32>
      %33 = arith.maximumf %30, %32 : vector<8x1xf32>
      %34 = arith.subf %30, %33 : vector<8x1xf32>
      %35 = math.exp %34 : vector<8x1xf32>
      %36 = vector.broadcast %33 : vector<8x1xf32> to vector<8x8xf32>
      %37 = arith.subf %29, %36 : vector<8x8xf32>
      %38 = math.exp %37 : vector<8x8xf32>
      %c0_24 = arith.constant 0 : index
      %c0_25 = arith.constant 0 : index
      %39 = vector.load %arg11[%c0_24, %c0_25] : memref<8x1xf32, #tpu.memory_space<vmem>>, vector<8x1xf32>
      %40 = arith.mulf %35, %39 : vector<8x1xf32>
      %cst_26 = arith.constant dense<0.000000e+00> : vector<8xf32>
      %41 = vector.multi_reduction <add>, %38, %cst_26 [1] : vector<8x8xf32> to vector<8xf32>
      %42 = vector.shape_cast %41 : vector<8xf32> to vector<8x1xf32>
      %43 = arith.addf %40, %42 : vector<8x1xf32>
      %c0_27 = arith.constant 0 : index
      %c0_28 = arith.constant 0 : index
      %44 = vector.load %arg11[%c0_27, %c0_28] : memref<8x1xf32, #tpu.memory_space<vmem>>, vector<8x1xf32>
      tpu.vector_store %arg11[%c0_27, %c0_28], %43 {strides = array<i32>} : memref<8x1xf32, #tpu.memory_space<vmem>>, vector<8x1xf32>,
      %c0_29 = arith.constant 0 : index
      %c0_30 = arith.constant 0 : index
      %45 = vector.load %arg12[%c0_29, %c0_30] : memref<8x8xf32, #tpu.memory_space<vmem>>, vector<8x8xf32>
      %46 = vector.broadcast %35 : vector<8x1xf32> to vector<8x8xf32>
      %47 = arith.mulf %46, %45 : vector<8x8xf32>
      %cst_31 = arith.constant dense<0.000000e+00> : vector<8x8xf32>
      %48 = tpu.matmul %38, %24, %cst_31 {dimension_numbers = #tpu.dot_dimension_numbers<[1], [0], [0], [1], [0, 0, 1, 1], [], []>} : vector<8x8xf32>, vector<8x8xf32>, vector<8x8xf32> -> vector<8x8xf32>
      %49 = arith.addf %47, %48 : vector<8x8xf32>
      %c0_32 = arith.constant 0 : index
      %c0_33 = arith.constant 0 : index
      %50 = vector.load %arg12[%c0_32, %c0_33] : memref<8x8xf32, #tpu.memory_space<vmem>>, vector<8x8xf32>
      tpu.vector_store %arg12[%c0_32, %c0_33], %49 {strides = array<i32>} : memref<8x8xf32, #tpu.memory_space<vmem>>, vector<8x8xf32>,
      %c0_34 = arith.constant 0 : index
      %c0_35 = arith.constant 0 : index
      %51 = vector.load %arg10[%c0_34, %c0_35] : memref<8x1xf32, #tpu.memory_space<vmem>>, vector<8x1xf32>
      tpu.vector_store %arg10[%c0_34, %c0_35], %33 {strides = array<i32>} : memref<8x1xf32, #tpu.memory_space<vmem>>, vector<8x1xf32>,
    } else {
    }
    %c0_i32_5 = arith.constant 0 : i32
    %11 = arith.cmpi eq, %arg3, %c0_i32_5 : i32
    %12 = arith.extui %11 : i1 to i32
    %c0_i32_6 = arith.constant 0 : i32
    %13 = arith.cmpi ne, %12, %c0_i32_6 : i32
    scf.if %13 {
      %c0 = arith.constant 0 : index
      %c0_9 = arith.constant 0 : index
      %19 = vector.load %arg11[%c0, %c0_9] : memref<8x1xf32, #tpu.memory_space<vmem>>, vector<8x1xf32>
      %20 = tpu.reciprocal %19 {approx = true} : vector<8x1xf32> -> vector<8x1xf32>
      %c0_10 = arith.constant 0 : index
      %c0_11 = arith.constant 0 : index
      %21 = vector.load %arg12[%c0_10, %c0_11] : memref<8x8xf32, #tpu.memory_space<vmem>>, vector<8x8xf32>
      %22 = vector.broadcast %20 : vector<8x1xf32> to vector<8x8xf32>
      %23 = arith.mulf %21, %22 : vector<8x8xf32>
      %c0_12 = arith.constant 0 : index
      %c0_13 = arith.constant 0 : index
      %24 = vector.load %arg9[%c0_12, %c0_13] : memref<8x32xf32, #tpu.memory_space<vmem>>, vector<8x32xf32>
      %25 = arith.index_cast %arg2 : i32 to index
      %c0_14 = arith.constant 0 : index
      %c0_15 = arith.constant 0 : index
      %26 = vector.load %arg7[%25, %c0_14, %c0_15] : memref<4x8x32xf32, #tpu.memory_space<vmem>>, vector<1x8x32xf32>
      %27 = vector.shape_cast %26 : vector<1x8x32xf32> to vector<8x32xf32>
      %cst = arith.constant dense<0.000000e+00> : vector<8x32xf32>
      %28 = tpu.matmul %23, %27, %cst {dimension_numbers = #tpu.dot_dimension_numbers<[1], [0], [0], [1], [0, 0, 1, 1], [], []>} : vector<8x8xf32>, vector<8x32xf32>, vector<8x32xf32> -> vector<8x32xf32>
      %29 = arith.addf %24, %28 : vector<8x32xf32>
      %c0_16 = arith.constant 0 : index
      %c0_17 = arith.constant 0 : index
      %30 = vector.load %arg9[%c0_16, %c0_17] : memref<8x32xf32, #tpu.memory_space<vmem>>, vector<8x32xf32>
      tpu.vector_store %arg9[%c0_16, %c0_17], %29 {strides = array<i32>} : memref<8x32xf32, #tpu.memory_space<vmem>>, vector<8x32xf32>,
    } else {
    }
    %c0_i32_7 = arith.constant 0 : i32
    %14 = arith.cmpi eq, %arg3, %c0_i32_7 : i32
    %c3_i32 = arith.constant 3 : i32
    %15 = arith.cmpi eq, %arg2, %c3_i32 : i32
    %16 = arith.andi %14, %15 : i1
    %17 = arith.extui %16 : i1 to i32
    %c0_i32_8 = arith.constant 0 : i32
    %18 = arith.cmpi ne, %17, %c0_i32_8 : i32
    scf.if %18 {
      %c0 = arith.constant 0 : index
      %c0_9 = arith.constant 0 : index
      %19 = vector.load %arg9[%c0, %c0_9] : memref<8x32xf32, #tpu.memory_space<vmem>>, vector<8x32xf32>
      %c0_10 = arith.constant 0 : index
      %c0_11 = arith.constant 0 : index
      %c0_12 = arith.constant 0 : index
      %20 = vector.load %arg8[%c0_10, %c0_11, %c0_12] : memref<1x8x32xf32, #tpu.memory_space<vmem>>, vector<1x8x32xf32>
      %21 = vector.shape_cast %20 : vector<1x8x32xf32> to vector<8x32xf32>
      %22 = vector.shape_cast %19 : vector<8x32xf32> to vector<1x8x32xf32>
      tpu.vector_store %arg8[%c0_10, %c0_11, %c0_12], %22 {strides = array<i32>} : memref<1x8x32xf32, #tpu.memory_space<vmem>>, vector<1x8x32xf32>,
    } else {
    }
    return
  }
  func.func @transform_0(%arg0: i32, %arg1: i32, %arg2: i32, %arg3: i32) -> (i32, i32, i32, i32) {
    %c0_i32 = arith.constant 0 : i32
    %c0_i32_0 = arith.constant 0 : i32
    return %arg0, %arg2, %arg1, %c0_i32 : i32, i32, i32, i32
  }
  func.func @transform_1(%arg0: i32, %arg1: i32, %arg2: i32, %arg3: i32) -> (i32, i32, i32, i32) {
    %0 = arith.minsi %arg3, %arg1 : i32
    %c0_i32 = arith.constant 0 : i32
    %c0_i32_0 = arith.constant 0 : i32
    return %arg0, %arg2, %0, %c0_i32 : i32, i32, i32, i32
  }
  func.func @transform_2(%arg0: i32, %arg1: i32, %arg2: i32, %arg3: i32) -> (i32, i32, i32, i32) {
    %0 = arith.minsi %arg3, %arg1 : i32
    %c0_i32 = arith.constant 0 : i32
    %c0_i32_0 = arith.constant 0 : i32
    return %arg0, %arg2, %0, %c0_i32 : i32, i32, i32, i32
  }
  func.func @transform_3(%arg0: i32, %arg1: i32, %arg2: i32, %arg3: i32) -> (i32, i32, i32) {
    %c0_i32 = arith.constant 0 : i32
    %c0_i32_0 = arith.constant 0 : i32
    %c0_i32_1 = arith.constant 0 : i32
    %c0_i32_2 = arith.constant 0 : i32
    return %c0_i32, %c0_i32_0, %c0_i32_1 : i32, i32, i32
  }
  func.func @transform_4(%arg0: i32, %arg1: i32, %arg2: i32, %arg3: i32) -> (i32, i32, i32) {
    %c0_i32 = arith.constant 0 : i32
    %c0_i32_0 = arith.constant 0 : i32
    return %arg0, %arg1, %c0_i32 : i32, i32, i32
  }
}

</mosaic_0001>

<llo_original>
// kernel: tpu_custom_call.1
$region0: #{tpu_custom_call.1}
  #allocation0 [shape = 'u32[]', space=smem, size = 0x4, offset = 0x4, fixed_abs, tag = 'smem constant byte address 0x4 - core index']
  #allocation1 [shape = 'u32[144,128]{1,0:T(1,128)}', space=vmem, size = 0x12000, scoped, tag = 'internal scratch']
  #allocation2 [shape = 'f32[8,32]{1,0:T(8,128)}', space=vmem, size = 0x1000, scoped, tag = 'scratch operand']
  #allocation3 [shape = 'f32[8,1]{1,0:T(8,128)}', space=vmem, size = 0x1000, scoped, tag = 'scratch operand']
  #allocation4 [shape = 'f32[8,1]{1,0:T(8,128)}', space=vmem, size = 0x1000, scoped, tag = 'scratch operand']
  #allocation5 [shape = 'f32[8,8]{1,0:T(8,128)}', space=vmem, size = 0x1000, scoped, tag = 'scratch operand']
  %s0 = inlined_call_operand.hbm [shape: f32[2,4,8,8], index: 0, kind: input, shape index: {}]
  %s1 = inlined_call_operand.hbm [shape: f32[2,4,8,8], index: 1, kind: input, shape index: {}]
  %s2 = inlined_call_operand.hbm [shape: f32[2,4,8,8], index: 2, kind: input, shape index: {}]
  %s3 = inlined_call_operand.hbm [shape: f32[4,8,32], index: 3, kind: input, shape index: {}]
  %s4 = inlined_call_operand.hbm [shape: f32[2,8,32], index: 4, kind: output, shape index: {}]
  %s5 = sld [smem:[#allocation0]]
  $region93: #{tpu_custom_call.1} parent=0
    _
  %s7 = ssub.s32 1, %s5
  %s8 = scalar_select 0, %s7, %s5
  $region1: #{tpu_custom_call.1} parent=0
    #allocation6 [shape = 'u8[8192]{0}', space=vmem, size = 0x2000, scoped, tag = 'input window, operand 0']
    #allocation7 [shape = 's32[2]{0}', space=sflag, size = 0x8, scoped, tag = 'scoped memory for tpu_custom_call.1']
    #allocation8 [shape = 's32[2]{0}', space=sflag, size = 0x8, scoped, tag = 'scoped memory for tpu_custom_call.1']
    #allocation9 [shape = 'u8[8192]{0}', space=vmem, size = 0x2000, scoped, tag = 'input window, operand 1']
    #allocation10 [shape = 's32[2]{0}', space=sflag, size = 0x8, scoped, tag = 'scoped memory for tpu_custom_call.1']
    #allocation11 [shape = 'u8[8192]{0}', space=vmem, size = 0x2000, scoped, tag = 'input window, operand 2']
    #allocation12 [shape = 'u8[16384]{0}', space=vmem, size = 0x4000, scoped, tag = 'input window, operand 3, single buffered']
    #allocation13 [shape = 's32[1]{0}', space=sflag, size = 0x4, scoped, tag = 'scoped memory for tpu_custom_call.1']
    #allocation14 [shape = 'u8[8192]{0}', space=vmem, size = 0x2000, scoped, tag = 'output window, operand 0']
    %9 = vsyncpa [#allocation7], 0
    %s10 = scalar_lea.sflag [#allocation7], 1
    %11 = vsyncpa %s10, 0
    %12 = vsyncpa [#allocation10], 0
    %s13 = scalar_lea.sflag [#allocation10], 1
    %14 = vsyncpa %s13, 0
    %15 = vsyncpa [#allocation13], 0
    %16 = vsyncpa [#allocation8], 0
    %s17 = scalar_lea.sflag [#allocation8], 1
    %18 = vsyncpa %s17, 0
    loop: start=0, step=1, limit=10
    $region2: #{tpu_custom_call.1} parent=1 // loop_pre_header
      _
    $region3: #{tpu_custom_call.1} parent=1 // loop_header
      %s20 = sphi 0, %s24
      %p21 = scmp.ge.s32.totalorder %s20, 10
      %s27 = sphi 0, %s53
      %s28 = sphi 0, %s49
      %s29 = sphi 0, %s45
      %s30 = sphi 0, %s41
      %s31 = sphi 0, %s27
      %s32 = sphi 0, %s28
      %s33 = sphi 0, %s29
      %s34 = sphi 0, %s30
      %s35 = sphi 0, %s31
      %s36 = sphi 0, %s32
      %s37 = sphi 0, %s33
      %s38 = sphi 0, %s34
      %s60 = sphi 0, %s62
      %s63 = sphi 0, %s60
      %s64 = sphi 0, %s63
      %s80 = sphi 0, %s64
      %s94 = sphi 0, %s96
      %s97 = sphi 0, %s94
      %s98 = sphi 0, %s97
      %s114 = sphi 0, %s98
      %s128 = sphi 0, %s130
      %s131 = sphi 0, %s128
      %s132 = sphi 0, %s131
      %s148 = sphi 0, %s132
      %s152 = sphi 0, %s152
      %s154 = sphi 0, %s152
      %s155 = sphi 0, %s154
      %s169 = sphi 0, %s155
      %s177 = sphi 0, %s179
      %s180 = sphi 0, %s177
      %s181 = sphi 0, %s180
      %s197 = sphi 0, %s181
    $region4: #{tpu_custom_call.1} parent=1 // loop_header_branch
      %23 = sbr.rel (%p21) target = $region8
    $region5: #{tpu_custom_call.1} parent=1 // loop_body
      %s25 = ssub.s32 %s20, 1
      %s26 = ssub.s32 %s20, 2
      %s39 = sadd.s32 1, %s30
      %p40 = scmp.ge.s32.totalorder %s39, 1
      %s41 = scalar_select %p40, 0, %s39
      %s42 = sadd.s32 1, %s29
      %s43 = scalar_select %p40, %s42, %s29
      %p44 = scmp.ge.s32.totalorder %s43, 4
      %s45 = scalar_select %p44, 0, %s43
      %s46 = sadd.s32 1, %s28
      %s47 = scalar_select %p44, %s46, %s28
      %p48 = scmp.ge.s32.totalorder %s47, 1
      %s49 = scalar_select %p48, 0, %s47
      %s50 = sadd.s32 1, %s27
      %s51 = scalar_select %p48, %s50, %s27
      %p52 = scmp.ge.s32.totalorder %s51, 2
      %s53 = scalar_select %p52, 0, %s51
      %s54 = ssub.s32 %s27, %s53
      %s55 = ssub.s32 %s29, %s45
      %s56 = sor.u32 %s54, %s55
      %s57 = ssub.s32 %s28, %s49
      %s58 = sor.u32 %s56, %s57
      %p59 = scmp.eq.s32.totalorder %s58, 0
      %s61 = sadd.s32 %s60, 1
      %s62 = scalar_select %p59, %s60, %s61
      %p65 = pneg %p59
      %p66 = scmp.eq.s32.totalorder %s20, 7
      %p67 = por %p65, %p66
      %p68 = scmp.ne.s32.totalorder %s60, %s63
      %p69 = scmp.eq.s32.totalorder %s20, 0
      %p70 = por %p68, %p69
      %p71 = scmp.ne.s32.totalorder %s60, %s63
      %p72 = scmp.eq.s32.totalorder %s25, 7
      %p73 = por %p71, %p72
      %p74 = scmp.ne.s32.totalorder %s63, %s64
      %p75 = scmp.eq.s32.totalorder %s25, 0
      %p76 = por %p74, %p75
      %p77 = scmp.ne.s32.totalorder %s63, %s64
      %p78 = scmp.eq.s32.totalorder %s26, 7
      %p79 = por %p77, %p78
      %p81 = scmp.ne.s32.totalorder %s64, %s80
      %p82 = scmp.eq.s32.totalorder %s26, 0
      %p83 = por %p81, %p82
      %p84 = scmp.lt.s32.totalorder %s30, %s28
      %s85 = scalar_select %p84, %s30, %s28
      %p86 = scmp.lt.s32.totalorder %s41, %s49
      %s87 = scalar_select %p86, %s41, %s49
      %s88 = ssub.s32 %s27, %s53
      %s89 = ssub.s32 %s29, %s45
      %s90 = sor.u32 %s88, %s89
      %s91 = ssub.s32 %s85, %s87
      %s92 = sor.u32 %s90, %s91
      %p93 = scmp.eq.s32.totalorder %s92, 0
      %s95 = sadd.s32 %s94, 1
      %s96 = scalar_select %p93, %s94, %s95
      %p99 = pneg %p93
      %p100 = scmp.eq.s32.totalorder %s20, 7
      %p101 = por %p99, %p100
      %p102 = scmp.ne.s32.totalorder %s94, %s97
      %p103 = scmp.eq.s32.totalorder %s20, 0
      %p104 = por %p102, %p103
      %p105 = scmp.ne.s32.totalorder %s94, %s97
      %p106 = scmp.eq.s32.totalorder %s25, 7
      %p107 = por %p105, %p106
      %p108 = scmp.ne.s32.totalorder %s97, %s98
      %p109 = scmp.eq.s32.totalorder %s25, 0
      %p110 = por %p108, %p109
      %p111 = scmp.ne.s32.totalorder %s97, %s98
      %p112 = scmp.eq.s32.totalorder %s26, 7
      %p113 = por %p111, %p112
      %p115 = scmp.ne.s32.totalorder %s98, %s114
      %p116 = scmp.eq.s32.totalorder %s26, 0
      %p117 = por %p115, %p116
      %p118 = scmp.lt.s32.totalorder %s30, %s28
      %s119 = scalar_select %p118, %s30, %s28
      %p120 = scmp.lt.s32.totalorder %s41, %s49
      %s121 = scalar_select %p120, %s41, %s49
      %s122 = ssub.s32 %s27, %s53
      %s123 = ssub.s32 %s29, %s45
      %s124 = sor.u32 %s122, %s123
      %s125 = ssub.s32 %s119, %s121
      %s126 = sor.u32 %s124, %s125
      %p127 = scmp.eq.s32.totalorder %s126, 0
      %s129 = sadd.s32 %s128, 1
      %s130 = scalar_select %p127, %s128, %s129
      %p133 = pneg %p127
      %p134 = scmp.eq.s32.totalorder %s20, 7
      %p135 = por %p133, %p134
      %p136 = scmp.ne.s32.totalorder %s128, %s131
      %p137 = scmp.eq.s32.totalorder %s20, 0
      %p138 = por %p136, %p137
      %p139 = scmp.ne.s32.totalorder %s128, %s131
      %p140 = scmp.eq.s32.totalorder %s25, 7
      %p141 = por %p139, %p140
      %p142 = scmp.ne.s32.totalorder %s131, %s132
      %p143 = scmp.eq.s32.totalorder %s25, 0
      %p144 = por %p142, %p143
      %p145 = scmp.ne.s32.totalorder %s131, %s132
      %p146 = scmp.eq.s32.totalorder %s26, 7
      %p147 = por %p145, %p146
      %p149 = scmp.ne.s32.totalorder %s132, %s148
      %p150 = scmp.eq.s32.totalorder %s26, 0
      %p151 = por %p149, %p150
      %s153 = sadd.s32 %s152, 1
      %p156 = scmp.eq.s32.totalorder %s20, 7
      %p157 = scmp.ne.s32.totalorder %s152, %s154
      %p158 = scmp.eq.s32.totalorder %s20, 0
      %p159 = por %p157, %p158
      %p160 = scmp.ne.s32.totalorder %s152, %s154
      %p161 = scmp.eq.s32.totalorder %s25, 7
      %p162 = por %p160, %p161
      %p163 = scmp.ne.s32.totalorder %s154, %s155
      %p164 = scmp.eq.s32.totalorder %s25, 0
      %p165 = por %p163, %p164
      %p166 = scmp.ne.s32.totalorder %s154, %s155
      %p167 = scmp.eq.s32.totalorder %s26, 7
      %p168 = por %p166, %p167
      %p170 = scmp.ne.s32.totalorder %s155, %s169
      %p171 = scmp.eq.s32.totalorder %s26, 0
      %p172 = por %p170, %p171
      %s173 = ssub.s32 %s27, %s53
      %s174 = ssub.s32 %s28, %s49
      %s175 = sor.u32 %s173, %s174
      %p176 = scmp.eq.s32.totalorder %s175, 0
      %s178 = sadd.s32 %s177, 1
      %s179 = scalar_select %p176, %s177, %s178
      %p182 = pneg %p176
      %p183 = scmp.eq.s32.totalorder %s20, 7
      %p184 = por %p182, %p183
      %p185 = scmp.ne.s32.totalorder %s177, %s180
      %p186 = scmp.eq.s32.totalorder %s20, 0
      %p187 = por %p185, %p186
      %p188 = scmp.ne.s32.totalorder %s177, %s180
      %p189 = scmp.eq.s32.totalorder %s25, 7
      %p190 = por %p188, %p189
      %p191 = scmp.ne.s32.totalorder %s180, %s181
      %p192 = scmp.eq.s32.totalorder %s25, 0
      %p193 = por %p191, %p192
      %p194 = scmp.ne.s32.totalorder %s180, %s181
      %p195 = scmp.eq.s32.totalorder %s26, 7
      %p196 = por %p194, %p195
      %p198 = scmp.ne.s32.totalorder %s181, %s197
      %p199 = scmp.eq.s32.totalorder %s26, 0
      %p200 = por %p198, %p199
      %p201 = scmp.le.s32.totalorder 1, %s20
      %p202 = scmp.lt.s32.totalorder %s20, 9
      %p203 = pnand %p201, %p202
      %p204 = pneg %p203
      // Predicated region
      $region9: #{tpu_custom_call.1} parent=5 // pred_check
        _
      $region10: #{tpu_custom_call.1} parent=5 // pred_check_branch
        %206 = sbr.rel (%p203) target = $region12
      $region11: #{tpu_custom_call.1} parent=5 // pred_region
        %s207 = ssub.s32 %s20, 1
        // Predicated region
        $region13: #{tpu_custom_call.1} parent=11 // pred_check
          %p208 = pneg %p165
        $region14: #{tpu_custom_call.1} parent=11 // pred_check_branch
          %210 = sbr.rel (%p208) target = $region16
        $region15: #{tpu_custom_call.1} parent=11 // pred_region
          %s212 = ssub.s32 512, 512
          %213 = vsyncadd [#allocation13], %s212
          %s214 = sshll.u32 [#allocation12], 4
          %s215 = int_to_ptr.vmem [resolvable:$true] %s214
          %220 = dma.hbm_to_vmem [thread:$0]  %s3, 512, %s215, [#allocation13], 128, 128, 8
        $region16: #{tpu_custom_call.1} parent=11 // pred_fallthru
          _
      $region12: #{tpu_custom_call.1} parent=5 // pred_fallthru
        _
      %p221 = scmp.lt.s32.totalorder %s20, 8
      // Predicated region
      $region17: #{tpu_custom_call.1} parent=5 // pred_check
        %p222 = pneg %p221
      $region18: #{tpu_custom_call.1} parent=5 // pred_check_branch
        %224 = sbr.rel (%p222) target = $region20
      $region19: #{tpu_custom_call.1} parent=5 // pred_region
        // Predicated region
        $region21: #{tpu_custom_call.1} parent=19 // pred_check
          %p225 = pneg %p70
        $region22: #{tpu_custom_call.1} parent=19 // pred_check_branch
          %227 = sbr.rel (%p225) target = $region24
        $region23: #{tpu_custom_call.1} parent=19 // pred_region
          %s228 = sand.u32 %s60, 1
          %s229 = scalar_lea.sflag [#allocation7], %s228
          %s230 = sand.u32 %s60, 1
          %s231 = smul.addr %s230, 8
          %s232 = scalar_lea.vmem [#allocation6], %s231
          %s234 = ssub.s32 128, 128
          %235 = vsyncadd %s229, %s234
          %s236 = sadd.s32 %s28, %s29
          %s237 = smul.addr %s27, 4
          %s238 = sadd.s32 %s236, %s237
          %s239 = smul.addr %s238, 128
          %s240 = scalar_lea.hbm %s0, %s239
          %s242 = sshll.u32 %s232, 4
          %s243 = int_to_ptr.vmem [resolvable:$true] %s242
          %245 = dma.hbm_to_vmem [thread:$0]  %s240, 128, %s243, %s229
        $region24: #{tpu_custom_call.1} parent=19 // pred_fallthru
          _
        // Predicated region
        $region25: #{tpu_custom_call.1} parent=19 // pred_check
          %p246 = pneg %p104
        $region26: #{tpu_custom_call.1} parent=19 // pred_check_branch
          %248 = sbr.rel (%p246) target = $region28
        $region27: #{tpu_custom_call.1} parent=19 // pred_region
          %s249 = sand.u32 %s20, 1
          %s250 = scalar_lea.sflag [#allocation10], %s249
          %s251 = sand.u32 %s94, 1
          %s252 = smul.addr %s251, 8
          %s253 = scalar_lea.vmem [#allocation9], %s252
          %p254 = scmp.lt.s32.totalorder %s30, %s28
          %s255 = scalar_select %p254, %s30, %s28
          %s257 = ssub.s32 128, 128
          %258 = vsyncadd %s250, %s257
          %s259 = sadd.s32 %s255, %s29
          %s260 = smul.addr %s27, 4
          %s261 = sadd.s32 %s259, %s260
          %s262 = smul.addr %s261, 128
          %s263 = scalar_lea.hbm %s1, %s262
          %s265 = sshll.u32 %s253, 4
          %s266 = int_to_ptr.vmem [resolvable:$true] %s265
          %268 = dma.hbm_to_vmem [thread:$0]  %s263, 128, %s266, %s250
        $region28: #{tpu_custom_call.1} parent=19 // pred_fallthru
          _
        // Predicated region
        $region29: #{tpu_custom_call.1} parent=19 // pred_check
          %p269 = pneg %p138
        $region30: #{tpu_custom_call.1} parent=19 // pred_check_branch
          %271 = sbr.rel (%p269) target = $region32
        $region31: #{tpu_custom_call.1} parent=19 // pred_region
          %s272 = sand.u32 %s20, 1
          %s273 = scalar_lea.sflag [#allocation10], %s272
          %s274 = sand.u32 %s128, 1
          %s275 = smul.addr %s274, 8
          %s276 = scalar_lea.vmem [#allocation11], %s275
          %p277 = scmp.lt.s32.totalorder %s30, %s28
          %s278 = scalar_select %p277, %s30, %s28
          %s280 = ssub.s32 128, 128
          %281 = vsyncadd %s273, %s280
          %s282 = sadd.s32 %s278, %s29
          %s283 = smul.addr %s27, 4
          %s284 = sadd.s32 %s282, %s283
          %s285 = smul.addr %s284, 128
          %s286 = scalar_lea.hbm %s2, %s285
          %s288 = sshll.u32 %s276, 4
          %s289 = int_to_ptr.vmem [resolvable:$true] %s288
          %291 = dma.hbm_to_vmem [thread:$0]  %s286, 128, %s289, %s273
        $region32: #{tpu_custom_call.1} parent=19 // pred_fallthru
          _
      $region20: #{tpu_custom_call.1} parent=5 // pred_fallthru
        _
      %p292 = scmp.le.s32.totalorder 1, %s20
      %p293 = scmp.lt.s32.totalorder %s20, 9
      %p294 = pnand %p292, %p293
      %p295 = pneg %p294
      // Predicated region
      $region33: #{tpu_custom_call.1} parent=5 // pred_check
        _
      $region34: #{tpu_custom_call.1} parent=5 // pred_check_branch
        %297 = sbr.rel (%p294) target = $region36
      $region35: #{tpu_custom_call.1} parent=5 // pred_region
        %s298 = ssub.s32 %s20, 1
        %s299 = sand.u32 %s63, 1
        %s300 = scalar_lea.sflag [#allocation7], %s299
        %s301 = sand.u32 %s63, 1
        %s302 = smul.addr %s301, 8
        %s303 = scalar_lea.vmem [#allocation6], %s302
        // Predicated region
        $region37: #{tpu_custom_call.1} parent=35 // pred_check
          %p304 = pneg %p76
        $region38: #{tpu_custom_call.1} parent=35 // pred_check_branch
          %306 = sbr.rel (%p304) target = $region40
        $region39: #{tpu_custom_call.1} parent=35 // pred_region
          %307 = dma.done %s300, 128
        $region40: #{tpu_custom_call.1} parent=35 // pred_fallthru
          _
        %s308 = sand.u32 %s25, 1
        %s309 = scalar_lea.sflag [#allocation10], %s308
        %s310 = sand.u32 %s97, 1
        %s311 = smul.addr %s310, 8
        %s312 = scalar_lea.vmem [#allocation9], %s311
        // Predicated region
        $region41: #{tpu_custom_call.1} parent=35 // pred_check
          %p313 = pneg %p110
        $region42: #{tpu_custom_call.1} parent=35 // pred_check_branch
          %315 = sbr.rel (%p313) target = $region44
        $region43: #{tpu_custom_call.1} parent=35 // pred_region
          %316 = dma.done %s309, 128
        $region44: #{tpu_custom_call.1} parent=35 // pred_fallthru
          _
        %s317 = sand.u32 %s25, 1
        %s318 = scalar_lea.sflag [#allocation10], %s317
        %s319 = sand.u32 %s131, 1
        %s320 = smul.addr %s319, 8
        %s321 = scalar_lea.vmem [#allocation11], %s320
        // Predicated region
        $region45: #{tpu_custom_call.1} parent=35 // pred_check
          %p322 = pneg %p144
        $region46: #{tpu_custom_call.1} parent=35 // pred_check_branch
          %324 = sbr.rel (%p322) target = $region48
        $region47: #{tpu_custom_call.1} parent=35 // pred_region
          %325 = dma.done %s318, 128
        $region48: #{tpu_custom_call.1} parent=35 // pred_fallthru
          _
        // Predicated region
        $region49: #{tpu_custom_call.1} parent=35 // pred_check
          %p326 = pneg %p165
        $region50: #{tpu_custom_call.1} parent=35 // pred_check_branch
          %328 = sbr.rel (%p326) target = $region52
        $region51: #{tpu_custom_call.1} parent=35 // pred_region
          %329 = dma.done [#allocation13], 512
        $region52: #{tpu_custom_call.1} parent=35 // pred_fallthru
          _
        %s330 = sand.u32 %s63, 1
        %s331 = scalar_lea.sflag [#allocation7], %s330
        %s332 = sand.u32 %s63, 1
        %s333 = smul.addr %s332, 8
        %s334 = scalar_lea.vmem [#allocation6], %s333
        %p335 = pneg %p76
        %p336 = pneg %p73
        %s337 = sand.u32 %s25, 1
        %s338 = scalar_lea.sflag [#allocation10], %s337
        %s339 = sand.u32 %s97, 1
        %s340 = smul.addr %s339, 8
        %s341 = scalar_lea.vmem [#allocation9], %s340
        %p342 = pneg %p110
        %p343 = pneg %p107
        %s344 = sand.u32 %s25, 1
        %s345 = scalar_lea.sflag [#allocation10], %s344
        %s346 = sand.u32 %s131, 1
        %s347 = smul.addr %s346, 8
        %s348 = scalar_lea.vmem [#allocation11], %s347
        %p349 = pneg %p144
        %p350 = pneg %p141
        %p351 = pneg %p165
        %p352 = pneg %p162
        %p353 = pneg %p193
        %p354 = pneg %p190
        %s355 = sand.u32 %s180, 1
        %s356 = scalar_lea.sflag [#allocation8], %s355
        %s357 = sand.u32 %s180, 1
        %s358 = smul.addr %s357, 8
        %s359 = scalar_lea.vmem [#allocation14], %s358
        %p360 = scmp.lt.s32.totalorder %s34, %s32
        %s361 = scalar_select %p360, %s34, %s32
        %p362 = scmp.lt.s32.totalorder %s34, %s32
        %s363 = scalar_select %p362, %s34, %s32
        %p364 = scmp.eq.s32.totalorder %s33, 0
        %p365 = scmp.eq.s32.totalorder %s34, 0
        %p366 = pnand %p364, %p365
        %p367 = pneg %p366
        // Predicated region
        $region53: #{tpu_custom_call.1} parent=35 // pred_check
          _
        $region54: #{tpu_custom_call.1} parent=35 // pred_check_branch
          %369 = sbr.rel (%p366) target = $region56
        $region55: #{tpu_custom_call.1} parent=35 // pred_region
          %vm370 = vcmask 261120
          %371 = vst.msk [vmem:[#allocation2] sm:$0xff] %vm370, 0.0
        $region56: #{tpu_custom_call.1} parent=35 // pred_fallthru
          _
        // Predicated region
        $region57: #{tpu_custom_call.1} parent=35 // pred_check
          %p372 = pneg %p365
        $region58: #{tpu_custom_call.1} parent=35 // pred_check_branch
          %374 = sbr.rel (%p372) target = $region60
        $region59: #{tpu_custom_call.1} parent=35 // pred_region
          %vm375 = vcmask 7168
          %376 = vst.msk [vmem:[#allocation3] sm:$0xff] %vm375, -inf
          %377 = vst.msk [vmem:[#allocation4] sm:$0xff] %vm375, 0.0
          %vm378 = vcmask 64512
          %379 = vst.msk [vmem:[#allocation5] sm:$0xff] %vm378, 0.0
        $region60: #{tpu_custom_call.1} parent=35 // pred_fallthru
          _
        %p380 = scmp.le.s32.totalorder %s34, %s32
        // Predicated region
        $region61: #{tpu_custom_call.1} parent=35 // pred_check
          %p381 = pneg %p380
        $region62: #{tpu_custom_call.1} parent=35 // pred_check_branch
          %383 = sbr.rel (%p381) target = $region64
        $region63: #{tpu_custom_call.1} parent=35 // pred_region
          %v384 = vld [vmem:[%s303] sm:$0xff]
          %v385 = vld [vmem:[%s312] sm:$0xff]
          %v386 = vld [vmem:[%s321] sm:$0xff]
          %vm387 = vcmask 64512
          %v389 = vsel %vm387, %v384, 0
          %v392 = vsel %vm387, %v385, 0
          %394 = vmatprep.subr.mxu0 0.0
          %395 = vmatpush1.xpose.msra.mxu0 %v392
          %396 = vmatprep.subr.mxu0 0.0
          %397 = vmatpush1.xpose.msra.mxu0 0.0
          %398 = vmatprep.subr.mxu0 0.0
          %399 = vmatpush1.xpose.msra.mxu0 0.0
          %400 = vmatprep.subr.mxu0 0.0
          %401 = vmatpush1.xpose.msra.mxu0 0.0
          %402 = vmatprep.subr.mxu0 0.0
          %403 = vmatpush1.xpose.msra.mxu0 0.0
          %404 = vmatprep.subr.mxu0 0.0
          %405 = vmatpush1.xpose.msra.mxu0 0.0
          %406 = vmatprep.subr.mxu0 0.0
          %407 = vmatpush1.xpose.msra.mxu0 0.0
          %408 = vmatprep.subr.mxu0 0.0
          %409 = vmatpush1.xpose.msra.mxu0 0.0
          %410 = vmatprep.subr.mxu0 0.0
          %411 = vmatpush1.xpose.msra.mxu0 0.0
          %412 = vmatprep.subr.mxu0 0.0
          %413 = vmatpush1.xpose.msra.mxu0 0.0
          %414 = vmatprep.subr.mxu0 0.0
          %415 = vmatpush1.xpose.msra.mxu0 0.0
          %416 = vmatprep.subr.mxu0 0.0
          %417 = vmatpush1.xpose.msra.mxu0 0.0
          %418 = vmatprep.subr.mxu0 0.0
          %419 = vmatpush1.xpose.msra.mxu0 0.0
          %420 = vmatprep.subr.mxu0 0.0
          %421 = vmatpush1.xpose.msra.mxu0 0.0
          %422 = vmatprep.subr.mxu0 0.0
          %423 = vmatpush1.xpose.msra.mxu0 0.0
          %424 = vmatprep.subr.mxu0 0.0
          %425 = vmatpush1.xpose.msra.mxu0 0.0
          %426 = vmatprep.subr.mxu0 0.0
          %427 = vmatpush1.xpose.msra.mxu0 0.0
          %428 = vmatprep.subr.mxu0 0.0
          %429 = vmatpush1.xpose.msra.mxu0 0.0
          %430 = vmatprep.subr.mxu0 0.0
          %431 = vmatpush1.xpose.msra.mxu0 0.0
          %432 = vmatprep.subr.mxu0 0.0
          %433 = vmatpush1.xpose.msra.mxu0 0.0
          %434 = vmatprep.subr.mxu0 0.0
          %435 = vmatpush1.xpose.msra.mxu0 0.0
          %436 = vmatprep.subr.mxu0 0.0
          %437 = vmatpush1.xpose.msra.mxu0 0.0
          %438 = vmatprep.subr.mxu0 0.0
          %439 = vmatpush1.xpose.msra.mxu0 0.0
          %440 = vmatprep.subr.mxu0 0.0
          %441 = vmatpush1.xpose.msra.mxu0 0.0
          %442 = vmatprep.subr.mxu0 0.0
          %443 = vmatpush1.xpose.msra.mxu0 0.0
          %444 = vmatprep.subr.mxu0 0.0
          %445 = vmatpush1.xpose.msra.mxu0 0.0
          %446 = vmatprep.subr.mxu0 0.0
          %447 = vmatpush1.xpose.msra.mxu0 0.0
          %448 = vmatprep.subr.mxu0 0.0
          %449 = vmatpush1.xpose.msra.mxu0 0.0
          %450 = vmatprep.subr.mxu0 0.0
          %451 = vmatpush1.xpose.msra.mxu0 0.0
          %452 = vmatprep.subr.mxu0 0.0
          %453 = vmatpush1.xpose.msra.mxu0 0.0
          %454 = vmatprep.subr.mxu0 0.0
          %455 = vmatpush1.xpose.msra.mxu0 0.0
          %456 = vmatprep.subr.mxu0 0.0
          %457 = vmatpush1.xpose.msra.mxu0 0.0
          %458 = vmatprep.mubr.f32.mxu0 0.0
          %459 = vmatmul.mubr.f32.gmra.mrb[0].mxu0 %v389
          %v460 = vpop.f32.mrb[0].mxu0
          %v461 = vadd.f32 0.0, %v460
          %v462 = vpop.f32.mrb[0].mxu0
          %463 = vdwg.mxu0
          %p464 = scmp.eq.s32.totalorder %s34, %s32
          // Predicated region
          $region65: #{tpu_custom_call.1} parent=63 // pred_check
            %p465 = pneg %p464
          $region66: #{tpu_custom_call.1} parent=63 // pred_check_branch
            %467 = sbr.rel (%p465) target = $region68
          $region67: #{tpu_custom_call.1} parent=63 // pred_region
            %s468 = smul.u32 %s32, 8
            %v469 = vlaneseq
            %v470 = vshrl.u32 %v469, 7
            %v471 = vstv %s468
            %v472 = vadd.s32 %v471, %v470
            %s473 = smul.u32 %s34, 8
            %v474 = vlaneseq
            %v475 = vand.u32 %v474, 127
            %v476 = vstv %s473
            %v477 = vadd.s32 %v476, %v475
            %vm478 = vcmp.le.s32.totalorder %v477, %v472
            %v479 = vsel %vm478, %v461, -1e+30
          $region68: #{tpu_custom_call.1} parent=63 // pred_fallthru
            %v480 = vphi 0, %v479
          %p481 = pneg %p464
          // Predicated region
          $region69: #{tpu_custom_call.1} parent=63 // pred_check
            _
          $region70: #{tpu_custom_call.1} parent=63 // pred_check_branch
            %483 = sbr.rel (%p464) target = $region72
          $region71: #{tpu_custom_call.1} parent=63 // pred_region
            _
          $region72: #{tpu_custom_call.1} parent=63 // pred_fallthru
            %v484 = vphi %v480, %v461
          %v485 = vld [vmem:[#allocation3] sm:$0xff]
          %v486 = vsel %vm387, %v484, -inf
          %487 = vmax.xlane.f32.xlu0 %v486
          %v488 = vpop.xlane.xlu0 %487
          %v489 = vmax.f32 %v485, %v488
          %v490 = vsub.f32 %v485, %v489
          %v491 = vmul.f32 %v490, 1.442695
          %v492 = vpow.pop %v491
          %494 = vset.pattern.permute.xlu0 0
          %495 = vperm.xlu0 %494, %v489
          %v496 = vpop.permute.xlu0 %495
          %v498 = vsub.f32 %v484, %v496
          %v499 = vmul.f32 %v498, 1.442695
          %v500 = vpow.pop %v499
          %v501 = vld [vmem:[#allocation4] sm:$0xff]
          %v502 = vmul.f32 %v492, %v501
          %v503 = vsel %vm387, %v500, 0.0
          %504 = vadd.xlane.f32.xlu0 %v503
          %v505 = vpop.xlane.xlu0 %504
          %v506 = vadd.f32 %v502, %v505
          %vm507 = vcmask 7168
          %508 = vst.msk [vmem:[#allocation4] sm:$0xff] %vm507, %v506
          %v509 = vld [vmem:[#allocation5] sm:$0xff]
          %511 = vset.pattern.permute.xlu0 0
          %512 = vperm.xlu0 %511, %v492
          %v513 = vpop.permute.xlu0 %512
          %v515 = vmul.f32 %v513, %v509
          %v517 = vsel %vm387, %v500, 0
          %519 = vmatprep.subr.mxu0 0.0
          %520 = vmatpush1.msra.mxu0 %v386
          %521 = vmatprep.subr.mxu0 0.0
          %522 = vmatpush1.msra.mxu0 0.0
          %523 = vmatprep.subr.mxu0 0.0
          %524 = vmatpush1.msra.mxu0 0.0
          %525 = vmatprep.subr.mxu0 0.0
          %526 = vmatpush1.msra.mxu0 0.0
          %527 = vmatprep.subr.mxu0 0.0
          %528 = vmatpush1.msra.mxu0 0.0
          %529 = vmatprep.subr.mxu0 0.0
          %530 = vmatpush1.msra.mxu0 0.0
          %531 = vmatprep.subr.mxu0 0.0
          %532 = vmatpush1.msra.mxu0 0.0
          %533 = vmatprep.subr.mxu0 0.0
          %534 = vmatpush1.msra.mxu0 0.0
          %535 = vmatprep.subr.mxu0 0.0
          %536 = vmatpush1.msra.mxu0 0.0
          %537 = vmatprep.subr.mxu0 0.0
          %538 = vmatpush1.msra.mxu0 0.0
          %539 = vmatprep.subr.mxu0 0.0
          %540 = vmatpush1.msra.mxu0 0.0
          %541 = vmatprep.subr.mxu0 0.0
          %542 = vmatpush1.msra.mxu0 0.0
          %543 = vmatprep.subr.mxu0 0.0
          %544 = vmatpush1.msra.mxu0 0.0
          %545 = vmatprep.subr.mxu0 0.0
          %546 = vmatpush1.msra.mxu0 0.0
          %547 = vmatprep.subr.mxu0 0.0
          %548 = vmatpush1.msra.mxu0 0.0
          %549 = vmatprep.subr.mxu0 0.0
          %550 = vmatpush1.msra.mxu0 0.0
          %551 = vmatprep.subr.mxu0 0.0
          %552 = vmatpush1.msra.mxu0 0.0
          %553 = vmatprep.subr.mxu0 0.0
          %554 = vmatpush1.msra.mxu0 0.0
          %555 = vmatprep.subr.mxu0 0.0
          %556 = vmatpush1.msra.mxu0 0.0
          %557 = vmatprep.subr.mxu0 0.0
          %558 = vmatpush1.msra.mxu0 0.0
          %559 = vmatprep.subr.mxu0 0.0
          %560 = vmatpush1.msra.mxu0 0.0
          %561 = vmatprep.subr.mxu0 0.0
          %562 = vmatpush1.msra.mxu0 0.0
          %563 = vmatprep.subr.mxu0 0.0
          %564 = vmatpush1.msra.mxu0 0.0
          %565 = vmatprep.subr.mxu0 0.0
          %566 = vmatpush1.msra.mxu0 0.0
          %567 = vmatprep.subr.mxu0 0.0
          %568 = vmatpush1.msra.mxu0 0.0
          %569 = vmatprep.subr.mxu0 0.0
          %570 = vmatpush1.msra.mxu0 0.0
          %571 = vmatprep.subr.mxu0 0.0
          %572 = vmatpush1.msra.mxu0 0.0
          %573 = vmatprep.subr.mxu0 0.0
          %574 = vmatpush1.msra.mxu0 0.0
          %575 = vmatprep.subr.mxu0 0.0
          %576 = vmatpush1.msra.mxu0 0.0
          %577 = vmatprep.subr.mxu0 0.0
          %578 = vmatpush1.msra.mxu0 0.0
          %579 = vmatprep.subr.mxu0 0.0
          %580 = vmatpush1.msra.mxu0 0.0
          %581 = vmatprep.subr.mxu0 0.0
          %582 = vmatpush1.msra.mxu0 0.0
          %583 = vmatprep.mubr.f32.mxu0 0.0
          %584 = vmatmul.mubr.f32.gmra.mrb[0].mxu0 %v517
          %v585 = vpop.f32.mrb[0].mxu0
          %v586 = vadd.f32 0.0, %v585
          %v587 = vpop.f32.mrb[0].mxu0
          %588 = vdwg.mxu0
          %v589 = vadd.f32 %v515, %v586
          %590 = vst.msk [vmem:[#allocation5] sm:$0xff] %vm387, %v589
          %591 = vst.msk [vmem:[#allocation3] sm:$0xff] %vm507, %v489
        $region64: #{tpu_custom_call.1} parent=35 // pred_fallthru
          _
        // Predicated region
        $region73: #{tpu_custom_call.1} parent=35 // pred_check
          %p592 = pneg %p365
        $region74: #{tpu_custom_call.1} parent=35 // pred_check_branch
          %594 = sbr.rel (%p592) target = $region76
        $region75: #{tpu_custom_call.1} parent=35 // pred_region
          %v595 = vld [vmem:[#allocation4] sm:$0xff]
          %v596 = vrcp.pop %v595
          %v597 = vld [vmem:[#allocation5] sm:$0xff]
          %599 = vset.pattern.permute.xlu0 0
          %600 = vperm.xlu0 %599, %v596
          %v601 = vpop.permute.xlu0 %600
          %v603 = vmul.f32 %v597, %v601
          %v604 = vld [vmem:[#allocation2] sm:$0xff]
          %s605 = smul.u32 %s33, 8
          %s606 = scalar_lea.vmem [#allocation12], %s605
          %v607 = vld [vmem:[%s606] sm:$0xff]
          %vm608 = vcmask 64512
          %v610 = vsel %vm608, %v603, 0
          %612 = vmatprep.subr.mxu0 0.0
          %613 = vmatpush1.msra.mxu0 %v607
          %614 = vmatprep.subr.mxu0 0.0
          %615 = vmatpush1.msra.mxu0 0.0
          %616 = vmatprep.subr.mxu0 0.0
          %617 = vmatpush1.msra.mxu0 0.0
          %618 = vmatprep.subr.mxu0 0.0
          %619 = vmatpush1.msra.mxu0 0.0
          %620 = vmatprep.subr.mxu0 0.0
          %621 = vmatpush1.msra.mxu0 0.0
          %622 = vmatprep.subr.mxu0 0.0
          %623 = vmatpush1.msra.mxu0 0.0
          %624 = vmatprep.subr.mxu0 0.0
          %625 = vmatpush1.msra.mxu0 0.0
          %626 = vmatprep.subr.mxu0 0.0
          %627 = vmatpush1.msra.mxu0 0.0
          %628 = vmatprep.subr.mxu0 0.0
          %629 = vmatpush1.msra.mxu0 0.0
          %630 = vmatprep.subr.mxu0 0.0
          %631 = vmatpush1.msra.mxu0 0.0
          %632 = vmatprep.subr.mxu0 0.0
          %633 = vmatpush1.msra.mxu0 0.0
          %634 = vmatprep.subr.mxu0 0.0
          %635 = vmatpush1.msra.mxu0 0.0
          %636 = vmatprep.subr.mxu0 0.0
          %637 = vmatpush1.msra.mxu0 0.0
          %638 = vmatprep.subr.mxu0 0.0
          %639 = vmatpush1.msra.mxu0 0.0
          %640 = vmatprep.subr.mxu0 0.0
          %641 = vmatpush1.msra.mxu0 0.0
          %642 = vmatprep.subr.mxu0 0.0
          %643 = vmatpush1.msra.mxu0 0.0
          %644 = vmatprep.subr.mxu0 0.0
          %645 = vmatpush1.msra.mxu0 0.0
          %646 = vmatprep.subr.mxu0 0.0
          %647 = vmatpush1.msra.mxu0 0.0
          %648 = vmatprep.subr.mxu0 0.0
          %649 = vmatpush1.msra.mxu0 0.0
          %650 = vmatprep.subr.mxu0 0.0
          %651 = vmatpush1.msra.mxu0 0.0
          %652 = vmatprep.subr.mxu0 0.0
          %653 = vmatpush1.msra.mxu0 0.0
          %654 = vmatprep.subr.mxu0 0.0
          %655 = vmatpush1.msra.mxu0 0.0
          %656 = vmatprep.subr.mxu0 0.0
          %657 = vmatpush1.msra.mxu0 0.0
          %658 = vmatprep.subr.mxu0 0.0
          %659 = vmatpush1.msra.mxu0 0.0
          %660 = vmatprep.subr.mxu0 0.0
          %661 = vmatpush1.msra.mxu0 0.0
          %662 = vmatprep.subr.mxu0 0.0
          %663 = vmatpush1.msra.mxu0 0.0
          %664 = vmatprep.subr.mxu0 0.0
          %665 = vmatpush1.msra.mxu0 0.0
          %666 = vmatprep.subr.mxu0 0.0
          %667 = vmatpush1.msra.mxu0 0.0
          %668 = vmatprep.subr.mxu0 0.0
          %669 = vmatpush1.msra.mxu0 0.0
          %670 = vmatprep.subr.mxu0 0.0
          %671 = vmatpush1.msra.mxu0 0.0
          %672 = vmatprep.subr.mxu0 0.0
          %673 = vmatpush1.msra.mxu0 0.0
          %674 = vmatprep.subr.mxu0 0.0
          %675 = vmatpush1.msra.mxu0 0.0
          %676 = vmatprep.mubr.f32.mxu0 0.0
          %677 = vmatmul.mubr.f32.gmra.mrb[0].mxu0 %v610
          %v678 = vpop.f32.mrb[0].mxu0
          %v679 = vadd.f32 0.0, %v678
          %v680 = vpop.f32.mrb[0].mxu0
          %681 = vdwg.mxu0
          %v682 = vadd.f32 %v604, %v679
          %vm683 = vcmask 261120
          %684 = vst.msk [vmem:[#allocation2] sm:$0xff] %vm683, %v682
        $region76: #{tpu_custom_call.1} parent=35 // pred_fallthru
          _
        %p685 = scmp.eq.s32.totalorder %s33, 3
        %p686 = pnand %p365, %p685
        %p687 = pneg %p686
        // Predicated region
        $region77: #{tpu_custom_call.1} parent=35 // pred_check
          _
        $region78: #{tpu_custom_call.1} parent=35 // pred_check_branch
          %689 = sbr.rel (%p686) target = $region80
        $region79: #{tpu_custom_call.1} parent=35 // pred_region
          %v690 = vld [vmem:[#allocation2] sm:$0xff]
          %vm691 = vcmask 261120
          %692 = vst.msk [vmem:[%s359] sm:$0xff] %vm691, %v690
        $region80: #{tpu_custom_call.1} parent=35 // pred_fallthru
          _
        %s693 = sand.u32 %s180, 1
        %s694 = scalar_lea.sflag [#allocation8], %s693
        %s695 = sand.u32 %s180, 1
        %s696 = smul.addr %s695, 8
        %s697 = scalar_lea.vmem [#allocation14], %s696
        // Predicated region
        $region81: #{tpu_custom_call.1} parent=35 // pred_check
          %p698 = pneg %p190
        $region82: #{tpu_custom_call.1} parent=35 // pred_check_branch
          %700 = sbr.rel (%p698) target = $region84
        $region83: #{tpu_custom_call.1} parent=35 // pred_region
          %s702 = ssub.s32 128, 128
          %703 = vsyncadd %s694, %s702
          %s704 = sadd.s32 %s32, %s31
          %s705 = smul.addr %s704, 128
          %s706 = scalar_lea.hbm %s4, %s705
          %s708 = sshll.u32 %s697, 4
          %s709 = int_to_ptr.vmem [resolvable:$true] %s708
          %711 = dma.vmem_to_hbm [thread:$0]  %s709, 128, %s706, %s694
        $region84: #{tpu_custom_call.1} parent=35 // pred_fallthru
          _
      $region36: #{tpu_custom_call.1} parent=5 // pred_fallthru
        _
      %p712 = scmp.le.s32.totalorder 2, %s20
      // Predicated region
      $region85: #{tpu_custom_call.1} parent=5 // pred_check
        %p713 = pneg %p712
      $region86: #{tpu_custom_call.1} parent=5 // pred_check_branch
        %715 = sbr.rel (%p713) target = $region88
      $region87: #{tpu_custom_call.1} parent=5 // pred_region
        %s716 = ssub.s32 %s20, 2
        // Predicated region
        $region89: #{tpu_custom_call.1} parent=87 // pred_check
          %p717 = pneg %p196
        $region90: #{tpu_custom_call.1} parent=87 // pred_check_branch
          %719 = sbr.rel (%p717) target = $region92
        $region91: #{tpu_custom_call.1} parent=87 // pred_region
          %s720 = sand.u32 %s181, 1
          %s721 = scalar_lea.sflag [#allocation8], %s720
          %s722 = sand.u32 %s181, 1
          %s723 = smul.addr %s722, 8
          %s724 = scalar_lea.vmem [#allocation14], %s723
          %725 = dma.done %s721, 128
        $region92: #{tpu_custom_call.1} parent=87 // pred_fallthru
          _
      $region88: #{tpu_custom_call.1} parent=5 // pred_fallthru
        _
    $region6: #{tpu_custom_call.1} parent=1 // loop_footer
      %s24 = sadd.s32 1, %s20
    $region7: #{tpu_custom_call.1} parent=1 // loop_footer_branch
      %19 = sbr.rel target = $region3
    $region8: #{tpu_custom_call.1} parent=1 // loop_exit
      _
    %726 = vsyncpa [#allocation7], 1
    %s727 = scalar_lea.sflag [#allocation7], 1
    %728 = vsyncpa %s727, 1
    %729 = vsyncpa [#allocation10], 1
    %s730 = scalar_lea.sflag [#allocation10], 1
    %731 = vsyncpa %s730, 1
    %732 = vsyncpa [#allocation13], 1
    %733 = vsyncpa [#allocation8], 1
    %s734 = scalar_lea.sflag [#allocation8], 1
    %735 = vsyncpa %s734, 1

</llo_original>
